<compile_context>
chip_gen: v7x
topology: tpu7x:2x2x1
jax: 0.10.0
libtpu: 0.0.40
codegen_flags: <defaults>
</compile_context>

<pallas_src>
import math
from functools import partial

import jax
import jax.numpy as jnp
from jax.experimental import pallas as pl
from jax.experimental.pallas import tpu as pltpu


def repnet_kernel(x_ref, w1_ref, b1_ref, w2_ref, b2_ref, out_ref,
                  *, J, cam_off, reproj_off):
    x = x_ref[...]                                          # [TB, D] f32

    # ---- fused first layer: [x@w1l | x@w1c] in one 128-wide MXU pass ----
    h = jnp.dot(x, w1_ref[...], preferred_element_type=jnp.float32) + b1_ref[...]
    h = jnp.maximum(h, 0.0)                                 # [TB, 2H]

    # ---- fused (block-diagonal, zero-padded) second layer ----
    #   out2[:, 0:3J]    = pose_3d  (h[:, :H] @ w2l + b2l)
    #   out2[:, 3J:3J+6] = camera   (h[:, H:] @ w2c + b2c)
    #   remaining lanes  = 0        (w2/b2 zero-padded)
    out2 = jnp.dot(h, w2_ref[...], preferred_element_type=jnp.float32) + b2_ref[...]

    # ---- reprojection: per-row (2,3) @ (3,J), done as lane arithmetic ----
    px = out2[:, 0:J]
    py = out2[:, J:2 * J]
    pz = out2[:, 2 * J:3 * J]
    cam = out2[:, cam_off:cam_off + 6]

    r0 = cam[:, 0:1] * px + cam[:, 1:2] * py + cam[:, 2:3] * pz   # [TB, J]
    r1 = cam[:, 3:4] * px + cam[:, 4:5] * py + cam[:, 5:6] * pz   # [TB, J]
    r = jnp.concatenate([r0, r1], axis=-1)                        # [TB, 2J]

    # One full-width (unmasked, lane-dense) store + one small masked store.
    out_ref[...] = out2
    out_ref[:, reproj_off:reproj_off + 2 * J] = r


def pack_params(params, input_dim):
    """Concatenate/pad the per-branch weights into MXU-friendly fused weights."""
    D = input_dim
    J = D // 2
    H = params["w1l"].shape[1]
    H2 = 2 * H

    cam_off = 3 * J
    reproj_off = cam_off + 6
    total = reproj_off + 2 * J
    out_w = 128 * pl.cdiv(total, 128)          # lane-dense output width

    w1 = jnp.concatenate([params["w1l"], params["w1c"]], axis=1)   # [D, 2H]
    b1 = jnp.concatenate([params["b1l"], params["b1c"]], axis=1)   # [1, 2H]

    w2 = jnp.zeros((H2, out_w), jnp.float32)
    w2 = w2.at[0:H, 0:3 * J].set(params["w2l"])
    w2 = w2.at[H:H2, cam_off:cam_off + 6].set(params["w2c"])
    b2 = jnp.zeros((1, out_w), jnp.float32)
    b2 = b2.at[:, 0:3 * J].set(params["b2l"])
    b2 = b2.at[:, cam_off:cam_off + 6].set(params["b2c"])
    return (w1, b1, w2, b2), dict(J=J, cam_off=cam_off,
                                  reproj_off=reproj_off, out_w=out_w)


def repnet_forward(x, packed_params, layout):
    """Full RepNet forward in one Pallas call. Returns (camera_out, pose_3d, reprojected_x)."""
    w1, b1, w2, b2 = packed_params
    B, D = x.shape
    J = layout["J"]
    cam_off = layout["cam_off"]
    reproj_off = layout["reproj_off"]
    out_w = layout["out_w"]
    H2 = w1.shape[1]

    # Batch tile: multiple of 8 (sublane), capped so the x/out tiles stay well
    # under the 32 MiB scoped-VMEM default even on v7x (tile bytes ~ TB*640).
    # TODO(synk): cast operands to bf16 on v6e/v7x once accuracy budget allows.
    TB = min(8 * pl.cdiv(B, 8), 512)
    Bp = TB * pl.cdiv(B, TB)
    if Bp != B:
        x = jnp.pad(x, ((0, Bp - B), (0, 0)))
    grid = (Bp // TB,)

    flops = 2 * Bp * (D * H2 + H2 * out_w) + 8 * Bp * J
    bytes_accessed = 4 * (Bp * D + D * H2 + H2 + H2 * out_w + out_w + Bp * out_w)

    kernel = partial(repnet_kernel, J=J, cam_off=cam_off, reproj_off=reproj_off)

    packed = pl.pallas_call(
        kernel,
        out_shape=jax.ShapeDtypeStruct((Bp, out_w), jnp.float32),
        grid=grid,
        in_specs=[
            pl.BlockSpec((TB, D), lambda i: (i, 0)),
            pl.BlockSpec((D, H2), lambda i: (0, 0)),
            pl.BlockSpec((1, H2), lambda i: (0, 0)),
            pl.BlockSpec((H2, out_w), lambda i: (0, 0)),
            pl.BlockSpec((1, out_w), lambda i: (0, 0)),
        ],
        out_specs=pl.BlockSpec((TB, out_w), lambda i: (i, 0)),
        compiler_params=pltpu.CompilerParams(dimension_semantics=("parallel",)),
        cost_estimate=pl.CostEstimate(flops=flops, transcendentals=0,
                                      bytes_accessed=bytes_accessed),
    )(x, w1, b1, w2, b2)

    packed = packed[:B]
    pose_3d = packed[:, 0:3 * J]
    camera_out = packed[:, cam_off:cam_off + 6]
    reprojected_x = packed[:, reproj_off:reproj_off + 2 * J]
    return camera_out, pose_3d, reprojected_x


def init_params(key, input_dim, hidden):
    """Deterministic PyTorch-Linear-style init (uniform +/- 1/sqrt(fan_in))."""
    J = input_dim // 2
    ks = jax.random.split(key, 8)

    def lin(kw, kb, fan_in, fan_out):
        bound = 1.0 / math.sqrt(fan_in)
        w = jax.random.uniform(kw, (fan_in, fan_out), jnp.float32, -bound, bound)
        b = jax.random.uniform(kb, (1, fan_out), jnp.float32, -bound, bound)
        return w, b

    w1l, b1l = lin(ks[0], ks[1], input_dim, hidden)
    w2l, b2l = lin(ks[2], ks[3], hidden, 3 * J)
    w1c, b1c = lin(ks[4], ks[5], input_dim, hidden)
    w2c, b2c = lin(ks[6], ks[7], hidden, 6)
    return dict(w1l=w1l, b1l=b1l, w2l=w2l, b2l=b2l,
                w1c=w1c, b1c=b1c, w2c=w2c, b2c=b2c)


def repnet_reference(x, params):
    """Pure-JAX reference mirroring the PyTorch forward exactly."""
    B, D = x.shape
    J = D // 2
    h_l = jnp.maximum(x @ params["w1l"] + params["b1l"], 0.0)
    pose_3d = h_l @ params["w2l"] + params["b2l"]
    h_c = jnp.maximum(x @ params["w1c"] + params["b1c"], 0.0)
    camera_out = h_c @ params["w2c"] + params["b2c"]
    camera_matrix = camera_out.reshape((-1, 2, 3))
    pose_3d_matrix = pose_3d.reshape((-1, 3, J))
    reprojected_x = jnp.reshape(camera_matrix @ pose_3d_matrix, (-1, D))
    return camera_out, pose_3d, reprojected_x


if __name__ == "__main__":
    B = 8            # batch
    INPUT_DIM = 32   # 2D coords of 16 joints -> J = 16
    HIDDEN = 64      # per-branch hidden -> fused first layer is [32, 128]

    key = jax.random.PRNGKey(0)
    k_x, k_p = jax.random.split(key)
    x = jax.random.normal(k_x, (B, INPUT_DIM), dtype=jnp.float32)
    params = init_params(k_p, INPUT_DIM, HIDDEN)
    packed_params, layout = pack_params(params, INPUT_DIM)

    fwd = jax.jit(lambda xx, pp: repnet_forward(xx, pp, layout))
    cam, pose, reproj = fwd(x, packed_params)
    jax.block_until_ready((cam, pose, reproj))

    # Verify against the pure-JAX reference of the PyTorch forward.
    cam_r, pose_r, reproj_r = repnet_reference(x, params)
    assert cam.shape == (B, 6) and pose.shape == (B, 3 * INPUT_DIM // 2)
    assert reproj.shape == (B, INPUT_DIM)
    assert jnp.allclose(cam, cam_r, atol=1e-5, rtol=1e-5)
    assert jnp.allclose(pose, pose_r, atol=1e-5, rtol=1e-5)
    assert jnp.allclose(reproj, reproj_r, atol=1e-5, rtol=1e-5)

    print("KERNEL_OK")
</pallas_src>

<mosaic_0001>
module attributes {stable_mosaic.version = 11 : i64} {
  func.func @repnet_kernel(%arg0: i32, %arg1: memref<8x32xf32, #tpu.memory_space<vmem>>, %arg2: memref<32x128xf32, #tpu.memory_space<vmem>>, %arg3: memref<1x128xf32, #tpu.memory_space<vmem>>, %arg4: memref<128x128xf32, #tpu.memory_space<vmem>>, %arg5: memref<1x128xf32, #tpu.memory_space<vmem>>, %arg6: memref<8x128xf32, #tpu.memory_space<vmem>>) attributes {dimension_semantics = [#tpu.dimension_semantics<parallel>], iteration_bounds = array<i64: 1>, scalar_prefetch = 0 : i64, scratch_operands = 0 : i64, tpu.core_type = #tpu.core_type<tc>, window_params = [{transform_indices = @transform_0, window_bounds = array<i64: 8, 32>}, {pipeline_mode = #tpu.pipeline_mode<synchronous>, transform_indices = @transform_1, window_bounds = array<i64: 32, 128>}, {pipeline_mode = #tpu.pipeline_mode<synchronous>, transform_indices = @transform_2, window_bounds = array<i64: 1, 128>}, {pipeline_mode = #tpu.pipeline_mode<synchronous>, transform_indices = @transform_3, window_bounds = array<i64: 128, 128>}, {pipeline_mode = #tpu.pipeline_mode<synchronous>, transform_indices = @transform_4, window_bounds = array<i64: 1, 128>}, {transform_indices = @transform_5, window_bounds = array<i64: 8, 128>}]} {
    %c0 = arith.constant 0 : index
    %c0_0 = arith.constant 0 : index
    %0 = vector.load %arg1[%c0, %c0_0] : memref<8x32xf32, #tpu.memory_space<vmem>>, vector<8x32xf32>
    %c0_1 = arith.constant 0 : index
    %c0_2 = arith.constant 0 : index
    %1 = vector.load %arg2[%c0_1, %c0_2] : memref<32x128xf32, #tpu.memory_space<vmem>>, vector<32x128xf32>
    %cst = arith.constant dense<0.000000e+00> : vector<8x128xf32>
    %2 = tpu.matmul %0, %1, %cst {dimension_numbers = #tpu.dot_dimension_numbers<[1], [0], [0], [1], [0, 0, 1, 1], [], []>} : vector<8x32xf32>, vector<32x128xf32>, vector<8x128xf32> -> vector<8x128xf32>
    %c0_3 = arith.constant 0 : index
    %c0_4 = arith.constant 0 : index
    %3 = vector.load %arg3[%c0_3, %c0_4] : memref<1x128xf32, #tpu.memory_space<vmem>>, vector<1x128xf32>
    %4 = vector.broadcast %3 : vector<1x128xf32> to vector<8x128xf32>
    %5 = arith.addf %2, %4 : vector<8x128xf32>
    %cst_5 = arith.constant 0.000000e+00 : f32
    %6 = vector.broadcast %cst_5 : f32 to vector<8x128xf32>
    %7 = arith.maximumf %5, %6 : vector<8x128xf32>
    %c0_6 = arith.constant 0 : index
    %c0_7 = arith.constant 0 : index
    %8 = vector.load %arg4[%c0_6, %c0_7] : memref<128x128xf32, #tpu.memory_space<vmem>>, vector<128x128xf32>
    %cst_8 = arith.constant dense<0.000000e+00> : vector<8x128xf32>
    %9 = tpu.matmul %7, %8, %cst_8 {dimension_numbers = #tpu.dot_dimension_numbers<[1], [0], [0], [1], [0, 0, 1, 1], [], []>} : vector<8x128xf32>, vector<128x128xf32>, vector<8x128xf32> -> vector<8x128xf32>
    %c0_9 = arith.constant 0 : index
    %c0_10 = arith.constant 0 : index
    %10 = vector.load %arg5[%c0_9, %c0_10] : memref<1x128xf32, #tpu.memory_space<vmem>>, vector<1x128xf32>
    %11 = vector.broadcast %10 : vector<1x128xf32> to vector<8x128xf32>
    %12 = arith.addf %9, %11 : vector<8x128xf32>
    %13 = vector.extract_strided_slice %12 {offsets = [0, 0], sizes = [8, 16], strides = [1, 1]} : vector<8x128xf32> to vector<8x16xf32>
    %14 = vector.extract_strided_slice %12 {offsets = [0, 16], sizes = [8, 16], strides = [1, 1]} : vector<8x128xf32> to vector<8x16xf32>
    %15 = vector.extract_strided_slice %12 {offsets = [0, 32], sizes = [8, 16], strides = [1, 1]} : vector<8x128xf32> to vector<8x16xf32>
    %16 = vector.extract_strided_slice %12 {offsets = [0, 48], sizes = [8, 6], strides = [1, 1]} : vector<8x128xf32> to vector<8x6xf32>
    %17 = vector.extract_strided_slice %16 {offsets = [0, 0], sizes = [8, 1], strides = [1, 1]} : vector<8x6xf32> to vector<8x1xf32>
    %18 = vector.broadcast %17 : vector<8x1xf32> to vector<8x16xf32>
    %19 = arith.mulf %18, %13 : vector<8x16xf32>
    %20 = vector.extract_strided_slice %16 {offsets = [0, 1], sizes = [8, 1], strides = [1, 1]} : vector<8x6xf32> to vector<8x1xf32>
    %21 = vector.broadcast %20 : vector<8x1xf32> to vector<8x16xf32>
    %22 = arith.mulf %21, %14 : vector<8x16xf32>
    %23 = arith.addf %19, %22 : vector<8x16xf32>
    %24 = vector.extract_strided_slice %16 {offsets = [0, 2], sizes = [8, 1], strides = [1, 1]} : vector<8x6xf32> to vector<8x1xf32>
    %25 = vector.broadcast %24 : vector<8x1xf32> to vector<8x16xf32>
    %26 = arith.mulf %25, %15 : vector<8x16xf32>
    %27 = arith.addf %23, %26 : vector<8x16xf32>
    %28 = vector.extract_strided_slice %16 {offsets = [0, 3], sizes = [8, 1], strides = [1, 1]} : vector<8x6xf32> to vector<8x1xf32>
    %29 = vector.broadcast %28 : vector<8x1xf32> to vector<8x16xf32>
    %30 = arith.mulf %29, %13 : vector<8x16xf32>
    %31 = vector.extract_strided_slice %16 {offsets = [0, 4], sizes = [8, 1], strides = [1, 1]} : vector<8x6xf32> to vector<8x1xf32>
    %32 = vector.broadcast %31 : vector<8x1xf32> to vector<8x16xf32>
    %33 = arith.mulf %32, %14 : vector<8x16xf32>
    %34 = arith.addf %30, %33 : vector<8x16xf32>
    %35 = vector.extract_strided_slice %16 {offsets = [0, 5], sizes = [8, 1], strides = [1, 1]} : vector<8x6xf32> to vector<8x1xf32>
    %36 = vector.broadcast %35 : vector<8x1xf32> to vector<8x16xf32>
    %37 = arith.mulf %36, %15 : vector<8x16xf32>
    %38 = arith.addf %34, %37 : vector<8x16xf32>
    %39 = tpu.concatenate %27, %38 in 1 : vector<8x16xf32>, vector<8x16xf32> -> vector<8x32xf32>
    %c0_11 = arith.constant 0 : index
    %c0_12 = arith.constant 0 : index
    %40 = vector.load %arg6[%c0_11, %c0_12] : memref<8x128xf32, #tpu.memory_space<vmem>>, vector<8x128xf32>
    tpu.vector_store %arg6[%c0_11, %c0_12], %12 {strides = array<i32>} : memref<8x128xf32, #tpu.memory_space<vmem>>, vector<8x128xf32>,
    %c0_13 = arith.constant 0 : index
    %c54 = arith.constant 54 : index
    %41 = vector.load %arg6[%c0_13, %c54] : memref<8x128xf32, #tpu.memory_space<vmem>>, vector<8x32xf32>
    tpu.vector_store %arg6[%c0_13, %c54], %39 {strides = array<i32>} : memref<8x128xf32, #tpu.memory_space<vmem>>, vector<8x32xf32>,
    return
  }
  func.func @transform_0(%arg0: i32) -> (i32, i32) {
    %c0_i32 = arith.constant 0 : i32
    %c0_i32_0 = arith.constant 0 : i32
    return %arg0, %c0_i32 : i32, i32
  }
  func.func @transform_1(%arg0: i32) -> (i32, i32) {
    %c0_i32 = arith.constant 0 : i32
    %c0_i32_0 = arith.constant 0 : i32
    %c0_i32_1 = arith.constant 0 : i32
    return %c0_i32, %c0_i32_0 : i32, i32
  }
  func.func @transform_2(%arg0: i32) -> (i32, i32) {
    %c0_i32 = arith.constant 0 : i32
    %c0_i32_0 = arith.constant 0 : i32
    %c0_i32_1 = arith.constant 0 : i32
    return %c0_i32, %c0_i32_0 : i32, i32
  }
  func.func @transform_3(%arg0: i32) -> (i32, i32) {
    %c0_i32 = arith.constant 0 : i32
    %c0_i32_0 = arith.constant 0 : i32
    %c0_i32_1 = arith.constant 0 : i32
    return %c0_i32, %c0_i32_0 : i32, i32
  }
  func.func @transform_4(%arg0: i32) -> (i32, i32) {
    %c0_i32 = arith.constant 0 : i32
    %c0_i32_0 = arith.constant 0 : i32
    %c0_i32_1 = arith.constant 0 : i32
    return %c0_i32, %c0_i32_0 : i32, i32
  }
  func.func @transform_5(%arg0: i32) -> (i32, i32) {
    %c0_i32 = arith.constant 0 : i32
    %c0_i32_0 = arith.constant 0 : i32
    return %arg0, %c0_i32 : i32, i32
  }
}

</mosaic_0001>

<llo_original>
// kernel: _lambda_.1
$region0: #{_lambda_.1}
  #allocation0 [shape = 'u32[]', space=smem, size = 0x4, offset = 0x4, fixed_abs, tag = 'smem constant byte address 0x4 - core index']
  #allocation1 [shape = 'u32[144,128]{1,0:T(1,128)}', space=vmem, size = 0x12000, scoped, tag = 'internal scratch']
  %s0 = inlined_call_operand.hbm [shape: f32[8,32], index: 0, kind: input, shape index: {}]
  %s1 = inlined_call_operand.hbm [shape: f32[32,128], index: 1, kind: input, shape index: {}]
  %s2 = inlined_call_operand.vmem [shape: f32[1,128], index: 2, kind: input, shape index: {}]
  %s3 = inlined_call_operand.hbm [shape: f32[128,128], index: 3, kind: input, shape index: {}]
  %s4 = inlined_call_operand.vmem [shape: f32[1,128], index: 4, kind: input, shape index: {}]
  %s5 = inlined_call_operand.vmem [shape: f32[8,128], index: 5, kind: output, shape index: {}]
  %s6 = sld [smem:[#allocation0]]
  $region42: #{_lambda_.1} parent=0
    _
  %s8 = ssub.s32 1, %s6
  %s9 = scalar_select 0, %s8, %s6
  $region1: #{_lambda_.1} parent=0
    #allocation2 [shape = 'u8[4096]{0}', space=vmem, size = 0x1000, scoped, tag = 'input window, operand 0, single buffered']
    #allocation3 [shape = 's32[1]{0}', space=sflag, size = 0x4, scoped, tag = 'scoped memory for _lambda_.1']
    #allocation4 [shape = 'u8[16384]{0}', space=vmem, size = 0x4000, scoped, tag = 'input window, operand 1, single buffered']
    #allocation5 [shape = 's32[1]{0}', space=sflag, size = 0x4, scoped, tag = 'scoped memory for _lambda_.1']
    #allocation6 [shape = 'u8[65536]{0}', space=vmem, size = 0x10000, scoped, tag = 'input window, operand 3, single buffered']
    %10 = vsyncpa [#allocation3], 0
    %11 = vsyncpa [#allocation5], 0
    // Predicated region
    $region2: #{_lambda_.1} parent=1 // pred_check
      _
    $region3: #{_lambda_.1} parent=1 // pred_check_branch
      %13 = sbr.rel (0) target = $region5
    $region4: #{_lambda_.1} parent=1 // pred_region
      %s15 = ssub.s32 128, 128
      %16 = vsyncadd [#allocation3], %s15
      %s18 = sshll.u32 [#allocation2], 4
      %s19 = int_to_ptr.vmem [resolvable:$true] %s18
      %21 = dma.hbm_to_vmem [thread:$0]  %s0, 128, %s19, [#allocation3]
    $region5: #{_lambda_.1} parent=1 // pred_fallthru
      _
    // Predicated region
    $region6: #{_lambda_.1} parent=1 // pred_check
      _
    $region7: #{_lambda_.1} parent=1 // pred_check_branch
      %23 = sbr.rel (0) target = $region9
    $region8: #{_lambda_.1} parent=1 // pred_region
      %s25 = ssub.s32 512, 512
      %26 = vsyncadd [#allocation5], %s25
      %s27 = sshll.u32 [#allocation4], 4
      %s28 = int_to_ptr.vmem [resolvable:$true] %s27
      %33 = dma.hbm_to_vmem [thread:$0]  %s1, 512, %s28, [#allocation5], 128, 128, 8
    $region9: #{_lambda_.1} parent=1 // pred_fallthru
      _
    // Predicated region
    $region10: #{_lambda_.1} parent=1 // pred_check
      _
    $region11: #{_lambda_.1} parent=1 // pred_check_branch
      %35 = sbr.rel (0) target = $region13
    $region12: #{_lambda_.1} parent=1 // pred_region
      _
    $region13: #{_lambda_.1} parent=1 // pred_fallthru
      _
    // Predicated region
    $region14: #{_lambda_.1} parent=1 // pred_check
      _
    $region15: #{_lambda_.1} parent=1 // pred_check_branch
      %37 = sbr.rel (0) target = $region17
    $region16: #{_lambda_.1} parent=1 // pred_region
      %s39 = ssub.s32 2048, 2048
      %40 = vsyncadd [#allocation5], %s39
      %s41 = sshll.u32 [#allocation6], 4
      %s42 = int_to_ptr.vmem [resolvable:$true] %s41
      %47 = dma.hbm_to_vmem [thread:$0]  %s3, 2048, %s42, [#allocation5], 128, 128, 8
    $region17: #{_lambda_.1} parent=1 // pred_fallthru
      _
    // Predicated region
    $region18: #{_lambda_.1} parent=1 // pred_check
      _
    $region19: #{_lambda_.1} parent=1 // pred_check_branch
      %49 = sbr.rel (0) target = $region21
    $region20: #{_lambda_.1} parent=1 // pred_region
      _
    $region21: #{_lambda_.1} parent=1 // pred_fallthru
      _
    // Predicated region
    $region22: #{_lambda_.1} parent=1 // pred_check
      _
    $region23: #{_lambda_.1} parent=1 // pred_check_branch
      %51 = sbr.rel (0) target = $region25
    $region24: #{_lambda_.1} parent=1 // pred_region
      %52 = dma.done [#allocation3], 128
    $region25: #{_lambda_.1} parent=1 // pred_fallthru
      _
    // Predicated region
    $region26: #{_lambda_.1} parent=1 // pred_check
      _
    $region27: #{_lambda_.1} parent=1 // pred_check_branch
      %54 = sbr.rel (0) target = $region29
    $region28: #{_lambda_.1} parent=1 // pred_region
      %55 = dma.done [#allocation5], 512
    $region29: #{_lambda_.1} parent=1 // pred_fallthru
      _
    // Predicated region
    $region30: #{_lambda_.1} parent=1 // pred_check
      _
    $region31: #{_lambda_.1} parent=1 // pred_check_branch
      %57 = sbr.rel (0) target = $region33
    $region32: #{_lambda_.1} parent=1 // pred_region
      %58 = dma.done [#allocation5], 2048
    $region33: #{_lambda_.1} parent=1 // pred_fallthru
      _
    %v59 = vld [vmem:[#allocation2] sm:$0xff]
    %v60 = vld [vmem:[#allocation4] sm:$0xff]
    %v61 = vld [vmem:[#allocation4 + $0x8] sm:$0xff]
    %v62 = vld [vmem:[#allocation4 + $0x10] sm:$0xff]
    %v63 = vld [vmem:[#allocation4 + $0x18] sm:$0xff]
    %v64 = vld [vmem:[%s2] sm:$0x1]
    %v66 = vlaneseq
    %v67 = vshrl.u32 %v66, 7
    %v68 = vsub.s32 0, %v67
    %v69 = vrot.slane %v64, %v68
    %vm71 = vcmask 261120
    %v73 = vsel %vm71, %v59, 0
    %75 = vmatprep.subr.mxu0 0.0
    %76 = vmatpush1.msra.mxu0 %v60
    %77 = vmatprep.subr.mxu0 0.0
    %78 = vmatpush1.msra.mxu0 %v61
    %79 = vmatprep.subr.mxu0 0.0
    %80 = vmatpush1.msra.mxu0 %v62
    %81 = vmatprep.subr.mxu0 0.0
    %82 = vmatpush1.msra.mxu0 %v63
    %83 = vmatprep.subr.mxu0 0.0
    %84 = vmatpush1.msra.mxu0 0.0
    %85 = vmatprep.subr.mxu0 0.0
    %86 = vmatpush1.msra.mxu0 0.0
    %87 = vmatprep.subr.mxu0 0.0
    %88 = vmatpush1.msra.mxu0 0.0
    %89 = vmatprep.subr.mxu0 0.0
    %90 = vmatpush1.msra.mxu0 0.0
    %91 = vmatprep.subr.mxu0 0.0
    %92 = vmatpush1.msra.mxu0 0.0
    %93 = vmatprep.subr.mxu0 0.0
    %94 = vmatpush1.msra.mxu0 0.0
    %95 = vmatprep.subr.mxu0 0.0
    %96 = vmatpush1.msra.mxu0 0.0
    %97 = vmatprep.subr.mxu0 0.0
    %98 = vmatpush1.msra.mxu0 0.0
    %99 = vmatprep.subr.mxu0 0.0
    %100 = vmatpush1.msra.mxu0 0.0
    %101 = vmatprep.subr.mxu0 0.0
    %102 = vmatpush1.msra.mxu0 0.0
    %103 = vmatprep.subr.mxu0 0.0
    %104 = vmatpush1.msra.mxu0 0.0
    %105 = vmatprep.subr.mxu0 0.0
    %106 = vmatpush1.msra.mxu0 0.0
    %107 = vmatprep.subr.mxu0 0.0
    %108 = vmatpush1.msra.mxu0 0.0
    %109 = vmatprep.subr.mxu0 0.0
    %110 = vmatpush1.msra.mxu0 0.0
    %111 = vmatprep.subr.mxu0 0.0
    %112 = vmatpush1.msra.mxu0 0.0
    %113 = vmatprep.subr.mxu0 0.0
    %114 = vmatpush1.msra.mxu0 0.0
    %115 = vmatprep.subr.mxu0 0.0
    %116 = vmatpush1.msra.mxu0 0.0
    %117 = vmatprep.subr.mxu0 0.0
    %118 = vmatpush1.msra.mxu0 0.0
    %119 = vmatprep.subr.mxu0 0.0
    %120 = vmatpush1.msra.mxu0 0.0
    %121 = vmatprep.subr.mxu0 0.0
    %122 = vmatpush1.msra.mxu0 0.0
    %123 = vmatprep.subr.mxu0 0.0
    %124 = vmatpush1.msra.mxu0 0.0
    %125 = vmatprep.subr.mxu0 0.0
    %126 = vmatpush1.msra.mxu0 0.0
    %127 = vmatprep.subr.mxu0 0.0
    %128 = vmatpush1.msra.mxu0 0.0
    %129 = vmatprep.subr.mxu0 0.0
    %130 = vmatpush1.msra.mxu0 0.0
    %131 = vmatprep.subr.mxu0 0.0
    %132 = vmatpush1.msra.mxu0 0.0
    %133 = vmatprep.subr.mxu0 0.0
    %134 = vmatpush1.msra.mxu0 0.0
    %135 = vmatprep.subr.mxu0 0.0
    %136 = vmatpush1.msra.mxu0 0.0
    %137 = vmatprep.subr.mxu0 0.0
    %138 = vmatpush1.msra.mxu0 0.0
    %139 = vmatprep.mubr.f32.mxu0 0.0
    %140 = vmatmul.mubr.f32.gmra.mrb[0].mxu0 %v73
    %v141 = vpop.f32.mrb[0].mxu0
    %v142 = vadd.f32 %v69, %v141
    %v143 = vpop.f32.mrb[0].mxu0
    %144 = vdwg.mxu0
    %v145 = vmax.f32 %v142, 0.0
    %v146 = vld [vmem:[#allocation6] sm:$0xff]
    %v147 = vld [vmem:[#allocation6 + $0x8] sm:$0xff]
    %v148 = vld [vmem:[#allocation6 + $0x10] sm:$0xff]
    %v149 = vld [vmem:[#allocation6 + $0x18] sm:$0xff]
    %v150 = vld [vmem:[#allocation6 + $0x20] sm:$0xff]
    %v151 = vld [vmem:[#allocation6 + $0x28] sm:$0xff]
    %v152 = vld [vmem:[#allocation6 + $0x30] sm:$0xff]
    %v153 = vld [vmem:[#allocation6 + $0x38] sm:$0xff]
    %v154 = vld [vmem:[#allocation6 + $0x40] sm:$0xff]
    %v155 = vld [vmem:[#allocation6 + $0x48] sm:$0xff]
    %v156 = vld [vmem:[#allocation6 + $0x50] sm:$0xff]
    %v157 = vld [vmem:[#allocation6 + $0x58] sm:$0xff]
    %v158 = vld [vmem:[#allocation6 + $0x60] sm:$0xff]
    %v159 = vld [vmem:[#allocation6 + $0x68] sm:$0xff]
    %v160 = vld [vmem:[#allocation6 + $0x70] sm:$0xff]
    %v161 = vld [vmem:[#allocation6 + $0x78] sm:$0xff]
    %v162 = vld [vmem:[%s4] sm:$0x1]
    %v164 = vlaneseq
    %v165 = vshrl.u32 %v164, 7
    %v166 = vsub.s32 0, %v165
    %v167 = vrot.slane %v162, %v166
    %169 = vmatprep.subr.mxu0 0.0
    %170 = vmatpush1.msra.mxu0 %v146
    %171 = vmatprep.subr.mxu0 0.0
    %172 = vmatpush1.msra.mxu0 %v147
    %173 = vmatprep.subr.mxu0 0.0
    %174 = vmatpush1.msra.mxu0 %v148
    %175 = vmatprep.subr.mxu0 0.0
    %176 = vmatpush1.msra.mxu0 %v149
    %177 = vmatprep.subr.mxu0 0.0
    %178 = vmatpush1.msra.mxu0 %v150
    %179 = vmatprep.subr.mxu0 0.0
    %180 = vmatpush1.msra.mxu0 %v151
    %181 = vmatprep.subr.mxu0 0.0
    %182 = vmatpush1.msra.mxu0 %v152
    %183 = vmatprep.subr.mxu0 0.0
    %184 = vmatpush1.msra.mxu0 %v153
    %185 = vmatprep.subr.mxu0 0.0
    %186 = vmatpush1.msra.mxu0 %v154
    %187 = vmatprep.subr.mxu0 0.0
    %188 = vmatpush1.msra.mxu0 %v155
    %189 = vmatprep.subr.mxu0 0.0
    %190 = vmatpush1.msra.mxu0 %v156
    %191 = vmatprep.subr.mxu0 0.0
    %192 = vmatpush1.msra.mxu0 %v157
    %193 = vmatprep.subr.mxu0 0.0
    %194 = vmatpush1.msra.mxu0 %v158
    %195 = vmatprep.subr.mxu0 0.0
    %196 = vmatpush1.msra.mxu0 %v159
    %197 = vmatprep.subr.mxu0 0.0
    %198 = vmatpush1.msra.mxu0 %v160
    %199 = vmatprep.subr.mxu0 0.0
    %200 = vmatpush1.msra.mxu0 %v161
    %201 = vmatprep.subr.mxu0 0.0
    %202 = vmatpush1.msra.mxu0 0.0
    %203 = vmatprep.subr.mxu0 0.0
    %204 = vmatpush1.msra.mxu0 0.0
    %205 = vmatprep.subr.mxu0 0.0
    %206 = vmatpush1.msra.mxu0 0.0
    %207 = vmatprep.subr.mxu0 0.0
    %208 = vmatpush1.msra.mxu0 0.0
    %209 = vmatprep.subr.mxu0 0.0
    %210 = vmatpush1.msra.mxu0 0.0
    %211 = vmatprep.subr.mxu0 0.0
    %212 = vmatpush1.msra.mxu0 0.0
    %213 = vmatprep.subr.mxu0 0.0
    %214 = vmatpush1.msra.mxu0 0.0
    %215 = vmatprep.subr.mxu0 0.0
    %216 = vmatpush1.msra.mxu0 0.0
    %217 = vmatprep.subr.mxu0 0.0
    %218 = vmatpush1.msra.mxu0 0.0
    %219 = vmatprep.subr.mxu0 0.0
    %220 = vmatpush1.msra.mxu0 0.0
    %221 = vmatprep.subr.mxu0 0.0
    %222 = vmatpush1.msra.mxu0 0.0
    %223 = vmatprep.subr.mxu0 0.0
    %224 = vmatpush1.msra.mxu0 0.0
    %225 = vmatprep.subr.mxu0 0.0
    %226 = vmatpush1.msra.mxu0 0.0
    %227 = vmatprep.subr.mxu0 0.0
    %228 = vmatpush1.msra.mxu0 0.0
    %229 = vmatprep.subr.mxu0 0.0
    %230 = vmatpush1.msra.mxu0 0.0
    %231 = vmatprep.subr.mxu0 0.0
    %232 = vmatpush1.msra.mxu0 0.0
    %233 = vmatprep.mubr.f32.mxu0 0.0
    %234 = vmatmul.mubr.f32.gmra.mrb[0].mxu0 %v145
    %v235 = vpop.f32.mrb[0].mxu0
    %v236 = vadd.f32 %v167, %v235
    %v237 = vpop.f32.mrb[0].mxu0
    %238 = vdwg.mxu0
    %240 = vset.pattern.permute.xlu0 48
    %241 = vperm.xlu0 %240, %v236
    %v242 = vpop.permute.xlu0 %241
    %v244 = vmul.f32 %v242, %v236
    %245 = vset.pattern.permute.xlu0 49
    %246 = vperm.xlu0 %245, %v236
    %v247 = vpop.permute.xlu0 %246
    %v249 = vmul.f32 %v247, %v236
    %251 = vrot.lane.b32.xlu0 %v249, 112
    %v252 = vpop.permute.xlu0 %251
    %v254 = vadd.f32 %v244, %v252
    %255 = vset.pattern.permute.xlu0 50
    %256 = vperm.xlu0 %255, %v236
    %v257 = vpop.permute.xlu0 %256
    %v259 = vmul.f32 %v257, %v236
    %261 = vrot.lane.b32.xlu0 %v259, 96
    %v262 = vpop.permute.xlu0 %261
    %v264 = vadd.f32 %v254, %v262
    %265 = vset.pattern.permute.xlu0 51
    %266 = vperm.xlu0 %265, %v236
    %v267 = vpop.permute.xlu0 %266
    %v269 = vmul.f32 %v267, %v236
    %270 = vset.pattern.permute.xlu0 52
    %271 = vperm.xlu0 %270, %v236
    %v272 = vpop.permute.xlu0 %271
    %v274 = vmul.f32 %v272, %v236
    %276 = vrot.lane.b32.xlu0 %v274, 112
    %v277 = vpop.permute.xlu0 %276
    %v279 = vadd.f32 %v269, %v277
    %280 = vset.pattern.permute.xlu0 53
    %281 = vperm.xlu0 %280, %v236
    %v282 = vpop.permute.xlu0 %281
    %v284 = vmul.f32 %v282, %v236
    %286 = vrot.lane.b32.xlu0 %v284, 96
    %v287 = vpop.permute.xlu0 %286
    %v289 = vadd.f32 %v279, %v287
    %291 = vrot.lane.b32.xlu0 %v289, 16
    %v292 = vpop.permute.xlu0 %291
    %vm294 = vcmask 130048
    %v295 = vsel %vm294, %v264, %v292
    %296 = vst [vmem:[%s5] sm:$0xff] %v236
    %298 = vrot.lane.b32.xlu0 %v295, 54
    %v299 = vpop.permute.xlu0 %298
    %vm301 = vcmask 703920
    %302 = vst.msk [vmem:[%s5] sm:$0xff] %vm301, %v299
    // Predicated region
    $region34: #{_lambda_.1} parent=1 // pred_check
      _
    $region35: #{_lambda_.1} parent=1 // pred_check_branch
      %304 = sbr.rel (0) target = $region37
    $region36: #{_lambda_.1} parent=1 // pred_region
      _
    $region37: #{_lambda_.1} parent=1 // pred_fallthru
      _
    // Predicated region
    $region38: #{_lambda_.1} parent=1 // pred_check
      _
    $region39: #{_lambda_.1} parent=1 // pred_check_branch
      %306 = sbr.rel (0) target = $region41
    $region40: #{_lambda_.1} parent=1 // pred_region
      _
    $region41: #{_lambda_.1} parent=1 // pred_fallthru
      _
    %307 = vsyncpa [#allocation3], 1
    %308 = vsyncpa [#allocation5], 1

</llo_original>
